<compile_context>
chip_gen: v6e
topology: v6e:2x2x1
jax: 0.10.0
libtpu: 0.0.40
codegen_flags: <defaults>
</compile_context>

<pallas_src>
import functools
import math

import jax
import jax.numpy as jnp
from jax import lax
from jax.experimental import pallas as pl
from jax.experimental.pallas import tpu as pltpu


_NEG_MASK = -1e30  # large finite negative: safe even for heavily masked rows


# ---------------------------------------------------------------------------
# Generation-aware VMEM budget / tile selection
# ---------------------------------------------------------------------------
def _vmem_capacity_bytes():
    try:
        cap = int(pltpu.get_tpu_info().vmem_capacity_bytes)
        if cap > 0:
            return cap
    except Exception:
        pass
    return 128 * 1024 * 1024


_VMEM_CAP = _vmem_capacity_bytes()
_VMEM_LIMIT = (_VMEM_CAP * 3) // 4          # headroom: ~48 MiB on v7x, ~96 MiB on v5e/v6e
_BIG_VMEM = _VMEM_CAP >= 100 * 1024 * 1024  # v5e/v6e (128 MiB) vs v7x (64 MiB)


def _compiler_params(dims):
    return pltpu.CompilerParams(dimension_semantics=dims,
                                vmem_limit_bytes=_VMEM_LIMIT)


def _round_up(x, m):
    return ((x + m - 1) // m) * m


def _pick_tile(dim, candidates):
    for c in candidates:
        if dim >= c and dim % c == 0:
            return c
    return dim


def _pick_tq(s):
    # Largest query-tile that divides S and still gives >= 2 tiles.
    for c in (128, 64, 32, 16, 8):
        if s % c == 0 and s // c >= 2:
            return c
    return s


# ---------------------------------------------------------------------------
# In-kernel helpers (fp32 math; matmul inputs bf16 with fp32 MXU accumulation)
# ---------------------------------------------------------------------------
def _layernorm(x, scale, shift, eps=1e-5):
    mean = jnp.mean(x, axis=-1, keepdims=True)
    var = jnp.mean((x - mean) ** 2, axis=-1, keepdims=True)
    return (x - mean) * lax.rsqrt(var + eps) * scale + shift


def _gelu(x):
    # tanh-approximate GELU (matches the GPT-from-scratch reference impl).
    return 0.5 * x * (1.0 + jnp.tanh(
        jnp.sqrt(2.0 / jnp.pi) * (x + 0.044715 * x * x * x)))


# ---------------------------------------------------------------------------
# Kernel 1: LN1 + fused QKV projection.  grid = (B,).
# ---------------------------------------------------------------------------
def _lnqkv_kernel(x_ref, lns_ref, lnb_ref, w_ref, o_ref):
    x = x_ref[0].astype(jnp.float32)                         # (S, E)
    h = _layernorm(x, lns_ref[...], lnb_ref[...]).astype(jnp.bfloat16)
    o_ref[0] = jnp.dot(h, w_ref[...],
                       preferred_element_type=jnp.float32).astype(o_ref.dtype)


def ln_qkv(x, ln_s, ln_b, wqkv):
    B, S, E = x.shape
    E3 = wqkv.shape[1]
    return pl.pallas_call(
        _lnqkv_kernel,
        out_shape=jax.ShapeDtypeStruct((B, S, E3), jnp.bfloat16),
        grid_spec=pltpu.PrefetchScalarGridSpec(
            num_scalar_prefetch=0,
            grid=(B,),
            in_specs=[
                pl.BlockSpec((1, S, E), lambda b: (b, 0, 0)),
                pl.BlockSpec((1, E), lambda b: (0, 0)),
                pl.BlockSpec((1, E), lambda b: (0, 0)),
                pl.BlockSpec((E, E3), lambda b: (0, 0)),
            ],
            out_specs=pl.BlockSpec((1, S, E3), lambda b: (b, 0, 0)),
        ),
        compiler_params=_compiler_params(("parallel",)),
    )(x, ln_s, ln_b, wqkv)


# ---------------------------------------------------------------------------
# Kernel 2: banded sliding-window attention + output projection + residual.
# grid = (B,).  q/k/v come in head-major (B, H, S, Dh) bf16; a fori_loop over
# query tiles slices only the KV band, batches all heads per matmul and
# writes lane-dense (tq, E) rows of  x + attn + bo.
# ---------------------------------------------------------------------------
def _attn_kernel(x_ref, q_ref, k_ref, v_ref, woh_ref, bo_ref, o_ref, *,
                 window_size, tq):
    _, H, S, Dh = q_ref.shape
    n_q = S // tq
    wb = (max(window_size - 1, 0) + tq - 1) // tq            # band blocks back
    band_blocks = min(wb + 1, n_q)
    band = band_blocks * tq

    woh = woh_ref[...]                                        # (H, Dh, E) bf16
    bo = bo_ref[...].astype(jnp.float32)                      # (1, E)

    def q_tile(qi, carry):
        q0 = pl.multiple_of(qi * tq, tq)
        kb = jnp.clip(qi - wb, 0, n_q - band_blocks)
        k0 = pl.multiple_of(kb * tq, tq)

        qt = q_ref[0, :, pl.ds(q0, tq), :]                    # (H, tq, Dh)
        kt = k_ref[0, :, pl.ds(k0, band), :]                  # (H, band, Dh)
        vt = v_ref[0, :, pl.ds(k0, band), :]                  # (H, band, Dh)

        # batched-head scores (q already pre-scaled by 1/sqrt(Dh) at init)
        s = jnp.einsum('hqd,hkd->hqk', qt, kt,
                       preferred_element_type=jnp.float32)    # (H, tq, band)
        rows = q0 + lax.broadcasted_iota(jnp.int32, (tq, band), 0)
        cols = k0 + lax.broadcasted_iota(jnp.int32, (tq, band), 1)
        inside = (cols <= rows) & ((rows - cols) < window_size)
        s = jnp.where(inside[None, :, :], s, _NEG_MASK)
        s = s - jnp.max(s, axis=-1, keepdims=True)
        p = jnp.exp(s)
        l = jnp.sum(p, axis=-1, keepdims=True)                # (H, tq, 1)
        ctx = jnp.einsum('hqk,hkd->hqd', p.astype(jnp.bfloat16), vt,
                         preferred_element_type=jnp.float32)  # (H, tq, Dh)
        ctx = (ctx / l).astype(jnp.bfloat16)                  # normalize after PV

        # output projection (head-major wo) + residual; lane-dense (tq, E) rows
        acc = x_ref[0, pl.ds(q0, tq), :].astype(jnp.float32) + bo
        for h in range(H):
            acc = acc + jnp.dot(ctx[h], woh[h],
                                preferred_element_type=jnp.float32)
        o_ref[0, pl.ds(q0, tq), :] = acc.astype(o_ref.dtype)
        return carry

    lax.fori_loop(0, n_q, q_tile, 0)


def attention(x, q, k, v, woh, bo, *, window_size, tq):
    B, S, E = x.shape
    _, H, _, Dh = q.shape
    kernel = functools.partial(_attn_kernel, window_size=window_size, tq=tq)
    return pl.pallas_call(
        kernel,
        out_shape=jax.ShapeDtypeStruct((B, S, E), x.dtype),
        grid_spec=pltpu.PrefetchScalarGridSpec(
            num_scalar_prefetch=0,
            grid=(B,),
            in_specs=[
                pl.BlockSpec((1, S, E), lambda b: (b, 0, 0)),        # x (residual)
                pl.BlockSpec((1, H, S, Dh), lambda b: (b, 0, 0, 0)),  # q
                pl.BlockSpec((1, H, S, Dh), lambda b: (b, 0, 0, 0)),  # k
                pl.BlockSpec((1, H, S, Dh), lambda b: (b, 0, 0, 0)),  # v
                pl.BlockSpec((H, Dh, E), lambda b: (0, 0, 0)),        # wo (head-major)
                pl.BlockSpec((1, E), lambda b: (0, 0)),               # bo
            ],
            out_specs=pl.BlockSpec((1, S, E), lambda b: (b, 0, 0)),
        ),
        compiler_params=_compiler_params(("parallel",)),
    )(x, q, k, v, woh, bo)


# ---------------------------------------------------------------------------
# Kernel 3: LN2 + streamed FFN with residual.  grid = (B, n_ff); each j step
# streams one (E, TFF)/(TFF, E) weight slice and accumulates into the
# resident fp32 output block.
# ---------------------------------------------------------------------------
def _ffn_kernel(x_ref, ln2s_ref, ln2b_ref, wf1_ref, bf1_ref, wf2_ref, bf2_ref,
                o_ref, h2_ref):
    @pl.when(pl.program_id(1) == 0)
    def _init():
        x = x_ref[0].astype(jnp.float32)                      # (S, E)
        h2_ref[...] = _layernorm(x, ln2s_ref[...], ln2b_ref[...]
                                 ).astype(jnp.bfloat16)
        o_ref[0] = (x + bf2_ref[...]).astype(o_ref.dtype)

    ff = jnp.dot(h2_ref[...], wf1_ref[...],
                 preferred_element_type=jnp.float32)          # (S, TFF)
    ff = _gelu(ff + bf1_ref[...])
    ff = jnp.dot(ff.astype(jnp.bfloat16), wf2_ref[...],
                 preferred_element_type=jnp.float32)          # (S, E)
    o_ref[0] = o_ref[0] + ff.astype(o_ref.dtype)


def ffn(x, ln2_s, ln2_b, wf1, bf1, wf2, bf2, *, ff_tile):
    B, S, E = x.shape
    H4 = wf1.shape[1]
    n_ff = max(1, H4 // ff_tile)
    return pl.pallas_call(
        _ffn_kernel,
        out_shape=jax.ShapeDtypeStruct((B, S, E), x.dtype),
        grid_spec=pltpu.PrefetchScalarGridSpec(
            num_scalar_prefetch=0,
            grid=(B, n_ff),
            in_specs=[
                pl.BlockSpec((1, S, E), lambda b, j: (b, 0, 0)),
                pl.BlockSpec((1, E), lambda b, j: (0, 0)),
                pl.BlockSpec((1, E), lambda b, j: (0, 0)),
                pl.BlockSpec((E, ff_tile), lambda b, j: (0, j)),
                pl.BlockSpec((1, ff_tile), lambda b, j: (0, j)),
                pl.BlockSpec((ff_tile, E), lambda b, j: (j, 0)),
                pl.BlockSpec((1, E), lambda b, j: (0, 0)),
            ],
            out_specs=pl.BlockSpec((1, S, E), lambda b, j: (b, 0, 0)),
            scratch_shapes=[pltpu.VMEM((S, E), jnp.bfloat16)],
        ),
        compiler_params=_compiler_params(("parallel", "arbitrary")),
    )(x, ln2_s, ln2_b, wf1, bf1, wf2, bf2)


# ---------------------------------------------------------------------------
# Kernel 4: final LayerNorm + output head (no bias), vocab-tiled.
# LN is hoisted: computed once per batch row (j == 0) into a VMEM scratch and
# reused for all vocab tiles.
# ---------------------------------------------------------------------------
def _head_kernel(x_ref, lns_ref, lnb_ref, w_ref, o_ref, h_ref):
    @pl.when(pl.program_id(1) == 0)
    def _():
        h_ref[...] = _layernorm(x_ref[0].astype(jnp.float32),
                                lns_ref[...], lnb_ref[...]).astype(jnp.bfloat16)
    o_ref[0] = jnp.dot(h_ref[...], w_ref[...],
                       preferred_element_type=jnp.float32).astype(o_ref.dtype)


def final_norm_and_head(x, ln_s, ln_b, w_out, *, v_tile):
    B, S, E = x.shape
    V = w_out.shape[1]
    v_pad = _round_up(V, v_tile)
    if v_pad != V:                                   # lane-dense vocab tiling
        w_out = jnp.pad(w_out, ((0, 0), (0, v_pad - V)))
    n_v = v_pad // v_tile
    logits = pl.pallas_call(
        _head_kernel,
        out_shape=jax.ShapeDtypeStruct((B, S, v_pad), x.dtype),
        grid_spec=pltpu.PrefetchScalarGridSpec(
            num_scalar_prefetch=0,
            grid=(B, n_v),
            in_specs=[
                pl.BlockSpec((1, S, E), lambda b, j: (b, 0, 0)),
                pl.BlockSpec((1, E), lambda b, j: (0, 0)),
                pl.BlockSpec((1, E), lambda b, j: (0, 0)),
                pl.BlockSpec((E, v_tile), lambda b, j: (0, j)),
            ],
            out_specs=pl.BlockSpec((1, S, v_tile), lambda b, j: (b, 0, j)),
            scratch_shapes=[pltpu.VMEM((S, E), jnp.bfloat16)],
        ),
        compiler_params=_compiler_params(("parallel", "arbitrary")),
    )(x, ln_s, ln_b, w_out)
    return logits[..., :V] if v_pad != V else logits


# ---------------------------------------------------------------------------
# Parameters (weights pre-cast to bf16; wq/wk/wv fused, q pre-scaled)
# ---------------------------------------------------------------------------
def init_params(key, cfg):
    E = cfg["emb_dim"]
    V = cfg["vocab_size"]
    C = cfg["context_length"]
    H = cfg["n_heads"]
    Dh = E // H
    H4 = 4 * E
    std = 0.02
    keys = jax.random.split(key, 3 + cfg["n_layers"])

    def w(k, shape):
        return (jax.random.normal(k, shape, jnp.float32) * std
                ).astype(jnp.bfloat16)

    params = {
        "tok_emb": jax.random.normal(keys[0], (V, E), jnp.float32) * std,
        "pos_emb": jax.random.normal(keys[1], (C, E), jnp.float32) * std,
        "final_ln_s": jnp.ones((1, E), jnp.float32),
        "final_ln_b": jnp.zeros((1, E), jnp.float32),
        "w_out": w(keys[2], (E, V)),
        "blocks": [],
    }
    for li in range(cfg["n_layers"]):
        sub = jax.random.split(keys[3 + li], 6)
        wq = (jax.random.normal(sub[0], (E, E), jnp.float32) * std
              / math.sqrt(Dh))                      # fold 1/sqrt(Dh) into wq
        wk = jax.random.normal(sub[1], (E, E), jnp.float32) * std
        wv = jax.random.normal(sub[2], (E, E), jnp.float32) * std
        params["blocks"].append({
            "wqkv": jnp.concatenate([wq, wk, wv], axis=1).astype(jnp.bfloat16),
            "wo": w(sub[3], (E, E)),
            "bo": jnp.zeros((1, E), jnp.float32),
            "ln1_s": jnp.ones((1, E), jnp.float32),
            "ln1_b": jnp.zeros((1, E), jnp.float32),
            "ln2_s": jnp.ones((1, E), jnp.float32),
            "ln2_b": jnp.zeros((1, E), jnp.float32),
            "wf1": w(sub[4], (E, H4)),
            "bf1": jnp.zeros((1, H4), jnp.float32),
            "wf2": w(sub[5], (H4, E)),
            "bf2": jnp.zeros((1, E), jnp.float32),
        })
    return params


# ---------------------------------------------------------------------------
# Full forward (embedding gather + head-split reshapes in XLA glue;
# all heavy compute in Pallas)
# ---------------------------------------------------------------------------
def gpt_forward(params, in_idx, cfg):
    B, S = in_idx.shape
    E = cfg["emb_dim"]
    H = cfg["n_heads"]
    Dh = E // H
    H4 = 4 * E
    V = cfg["vocab_size"]

    tok = jnp.take(params["tok_emb"], in_idx, axis=0)        # (B, S, E)
    pos = params["pos_emb"][:S][None, :, :]                  # (1, S, E)
    x = tok + pos                                            # drop_emb: identity

    ff_cands = (2048, 1024, 512, 256, 128) if _BIG_VMEM else (1024, 512, 256, 128)
    ff_tile = _pick_tile(H4, ff_cands)
    v_target = 4096 if _BIG_VMEM else 1024
    v_tile = v_target if V >= v_target else _round_up(V, 128)
    tq = _pick_tq(S)

    def split_heads(t):
        return t.reshape(B, S, H, Dh).transpose(0, 2, 1, 3)  # (B, H, S, Dh)

    for blk in params["blocks"]:
        qkv = ln_qkv(x, blk["ln1_s"], blk["ln1_b"], blk["wqkv"])   # (B,S,3E) bf16
        q, k, v = jnp.split(qkv, 3, axis=-1)
        x = attention(x, split_heads(q), split_heads(k), split_heads(v),
                      blk["wo"].reshape(H, Dh, E), blk["bo"],
                      window_size=cfg["window_size"], tq=tq)
        x = ffn(x, blk["ln2_s"], blk["ln2_b"], blk["wf1"], blk["bf1"],
                blk["wf2"], blk["bf2"], ff_tile=ff_tile)

    logits = final_norm_and_head(x, params["final_ln_s"],
                                 params["final_ln_b"], params["w_out"],
                                 v_tile=v_tile)
    return logits


if __name__ == "__main__":
    cfg = {
        "vocab_size": 64,
        "context_length": 16,
        "emb_dim": 32,
        "n_heads": 4,
        "n_layers": 2,
        "drop_rate": 0.0,        # inference: dropout is identity
        "qkv_bias": False,
        "window_size": 4,
    }
    key = jax.random.PRNGKey(0)
    pkey, dkey = jax.random.split(key)
    params = init_params(pkey, cfg)

    B, S = 2, 16                 # S=16 with tq=8 exercises the banded q-tile loop
    in_idx = jax.random.randint(dkey, (B, S), 0, cfg["vocab_size"],
                                dtype=jnp.int32)

    logits = gpt_forward(params, in_idx, cfg)
    logits = jax.block_until_ready(logits)
    assert logits.shape == (B, S, cfg["vocab_size"]), logits.shape
    assert bool(jnp.all(jnp.isfinite(logits)))
    print("KERNEL_OK")
</pallas_src>

<mosaic_0001>
module attributes {stable_mosaic.version = 11 : i64} {
  func.func @_lnqkv_kernel(%arg0: i32, %arg1: memref<1x16x32xf32, #tpu.memory_space<vmem>>, %arg2: memref<1x32xf32, #tpu.memory_space<vmem>>, %arg3: memref<1x32xf32, #tpu.memory_space<vmem>>, %arg4: memref<32x96xbf16, #tpu.memory_space<vmem>>, %arg5: memref<1x16x96xbf16, #tpu.memory_space<vmem>>) attributes {dimension_semantics = [#tpu.dimension_semantics<parallel>], iteration_bounds = array<i64: 2>, scalar_prefetch = 0 : i64, scratch_operands = 0 : i64, tpu.core_type = #tpu.core_type<tc>, window_params = [{transform_indices = @transform_0, window_bounds = array<i64: 1, 16, 32>}, {pipeline_mode = #tpu.pipeline_mode<synchronous>, transform_indices = @transform_1, window_bounds = array<i64: 1, 32>}, {pipeline_mode = #tpu.pipeline_mode<synchronous>, transform_indices = @transform_2, window_bounds = array<i64: 1, 32>}, {pipeline_mode = #tpu.pipeline_mode<synchronous>, transform_indices = @transform_3, window_bounds = array<i64: 32, 96>}, {transform_indices = @transform_4, window_bounds = array<i64: 1, 16, 96>}]} {
    %c0 = arith.constant 0 : index
    %c0_0 = arith.constant 0 : index
    %c0_1 = arith.constant 0 : index
    %0 = vector.load %arg1[%c0, %c0_0, %c0_1] : memref<1x16x32xf32, #tpu.memory_space<vmem>>, vector<1x16x32xf32>
    %1 = vector.shape_cast %0 : vector<1x16x32xf32> to vector<16x32xf32>
    %c0_2 = arith.constant 0 : index
    %c0_3 = arith.constant 0 : index
    %2 = vector.load %arg2[%c0_2, %c0_3] : memref<1x32xf32, #tpu.memory_space<vmem>>, vector<1x32xf32>
    %c0_4 = arith.constant 0 : index
    %c0_5 = arith.constant 0 : index
    %3 = vector.load %arg3[%c0_4, %c0_5] : memref<1x32xf32, #tpu.memory_space<vmem>>, vector<1x32xf32>
    %cst = arith.constant dense<0.000000e+00> : vector<16xf32>
    %4 = vector.multi_reduction <add>, %1, %cst [1] : vector<16x32xf32> to vector<16xf32>
    %5 = vector.shape_cast %4 : vector<16xf32> to vector<16x1xf32>
    %cst_6 = arith.constant 3.200000e+01 : f32
    %6 = vector.broadcast %cst_6 : f32 to vector<16x1xf32>
    %7 = arith.divf %5, %6 : vector<16x1xf32>
    %8 = vector.broadcast %7 : vector<16x1xf32> to vector<16x32xf32>
    %9 = arith.subf %1, %8 : vector<16x32xf32>
    %10 = arith.mulf %9, %9 : vector<16x32xf32>
    %cst_7 = arith.constant dense<0.000000e+00> : vector<16xf32>
    %11 = vector.multi_reduction <add>, %10, %cst_7 [1] : vector<16x32xf32> to vector<16xf32>
    %12 = vector.shape_cast %11 : vector<16xf32> to vector<16x1xf32>
    %cst_8 = arith.constant 3.200000e+01 : f32
    %13 = vector.broadcast %cst_8 : f32 to vector<16x1xf32>
    %14 = arith.divf %12, %13 : vector<16x1xf32>
    %15 = vector.broadcast %7 : vector<16x1xf32> to vector<16x32xf32>
    %16 = arith.subf %1, %15 : vector<16x32xf32>
    %cst_9 = arith.constant 9.99999974E-6 : f32
    %17 = vector.broadcast %cst_9 : f32 to vector<16x1xf32>
    %18 = arith.addf %14, %17 : vector<16x1xf32>
    %19 = math.rsqrt %18 : vector<16x1xf32>
    %20 = vector.broadcast %19 : vector<16x1xf32> to vector<16x32xf32>
    %21 = arith.mulf %16, %20 : vector<16x32xf32>
    %22 = vector.broadcast %2 : vector<1x32xf32> to vector<16x32xf32>
    %23 = arith.mulf %21, %22 : vector<16x32xf32>
    %24 = vector.broadcast %3 : vector<1x32xf32> to vector<16x32xf32>
    %25 = arith.addf %23, %24 : vector<16x32xf32>
    %26 = arith.truncf %25 : vector<16x32xf32> to vector<16x32xbf16>
    %c0_10 = arith.constant 0 : index
    %c0_11 = arith.constant 0 : index
    %27 = vector.load %arg4[%c0_10, %c0_11] : memref<32x96xbf16, #tpu.memory_space<vmem>>, vector<32x96xbf16>
    %cst_12 = arith.constant dense<0.000000e+00> : vector<16x96xf32>
    %28 = tpu.matmul %26, %27, %cst_12 {dimension_numbers = #tpu.dot_dimension_numbers<[1], [0], [0], [1], [0, 0, 1, 1], [], []>} : vector<16x32xbf16>, vector<32x96xbf16>, vector<16x96xf32> -> vector<16x96xf32>
    %29 = arith.truncf %28 : vector<16x96xf32> to vector<16x96xbf16>
    %c0_13 = arith.constant 0 : index
    %c0_14 = arith.constant 0 : index
    %c0_15 = arith.constant 0 : index
    %30 = vector.load %arg5[%c0_13, %c0_14, %c0_15] : memref<1x16x96xbf16, #tpu.memory_space<vmem>>, vector<1x16x96xbf16>
    %31 = vector.shape_cast %30 : vector<1x16x96xbf16> to vector<16x96xbf16>
    %32 = vector.shape_cast %29 : vector<16x96xbf16> to vector<1x16x96xbf16>
    tpu.vector_store %arg5[%c0_13, %c0_14, %c0_15], %32 {strides = array<i32>} : memref<1x16x96xbf16, #tpu.memory_space<vmem>>, vector<1x16x96xbf16>,
    return
  }
  func.func @transform_0(%arg0: i32) -> (i32, i32, i32) {
    %c0_i32 = arith.constant 0 : i32
    %c0_i32_0 = arith.constant 0 : i32
    %c0_i32_1 = arith.constant 0 : i32
    return %arg0, %c0_i32, %c0_i32_0 : i32, i32, i32
  }
  func.func @transform_1(%arg0: i32) -> (i32, i32) {
    %c0_i32 = arith.constant 0 : i32
    %c0_i32_0 = arith.constant 0 : i32
    %c0_i32_1 = arith.constant 0 : i32
    return %c0_i32, %c0_i32_0 : i32, i32
  }
  func.func @transform_2(%arg0: i32) -> (i32, i32) {
    %c0_i32 = arith.constant 0 : i32
    %c0_i32_0 = arith.constant 0 : i32
    %c0_i32_1 = arith.constant 0 : i32
    return %c0_i32, %c0_i32_0 : i32, i32
  }
  func.func @transform_3(%arg0: i32) -> (i32, i32) {
    %c0_i32 = arith.constant 0 : i32
    %c0_i32_0 = arith.constant 0 : i32
    %c0_i32_1 = arith.constant 0 : i32
    return %c0_i32, %c0_i32_0 : i32, i32
  }
  func.func @transform_4(%arg0: i32) -> (i32, i32, i32) {
    %c0_i32 = arith.constant 0 : i32
    %c0_i32_0 = arith.constant 0 : i32
    %c0_i32_1 = arith.constant 0 : i32
    return %arg0, %c0_i32, %c0_i32_0 : i32, i32, i32
  }
}

</mosaic_0001>

<llo_original>
// kernel: tpu_custom_call.1
$region0: #{tpu_custom_call.1}
  #allocation0 [shape = 'u32[]', space=smem, size = 0x4, offset = 0x4, fixed_abs, tag = 'smem constant byte address 0x4 - core index']
  #allocation1 [shape = 'u32[144,128]{1,0:T(1,128)}', space=vmem, size = 0x12000, scoped, tag = 'internal scratch']
  %s0 = inlined_call_operand.hbm [shape: f32[2,16,32], index: 0, kind: input, shape index: {}]
  %s1 = inlined_call_operand.vmem [shape: f32[1,32], index: 1, kind: input, shape index: {}]
  %s2 = inlined_call_operand.vmem [shape: f32[1,32], index: 2, kind: input, shape index: {}]
  %s3 = inlined_call_operand.hbm [shape: bf16[32,96], index: 3, kind: input, shape index: {}]
  %s4 = inlined_call_operand.hbm [shape: bf16[2,16,96], index: 4, kind: output, shape index: {}]
  %s5 = sld [smem:[#allocation0]]
  $region57: #{tpu_custom_call.1} parent=0
    _
  %s7 = ssub.s32 1, %s5
  %s8 = scalar_select 0, %s7, %s5
  $region1: #{tpu_custom_call.1} parent=0
    #allocation2 [shape = 'u8[16384]{0}', space=vmem, size = 0x4000, scoped, tag = 'input window, operand 0']
    #allocation3 [shape = 's32[2]{0}', space=sflag, size = 0x8, scoped, tag = 'scoped memory for tpu_custom_call.1']
    #allocation4 [shape = 's32[2]{0}', space=sflag, size = 0x8, scoped, tag = 'scoped memory for tpu_custom_call.1']
    #allocation5 [shape = 'u8[8192]{0}', space=vmem, size = 0x2000, scoped, tag = 'input window, operand 3, single buffered']
    #allocation6 [shape = 's32[1]{0}', space=sflag, size = 0x4, scoped, tag = 'scoped memory for tpu_custom_call.1']
    #allocation7 [shape = 'u8[8192]{0}', space=vmem, size = 0x2000, scoped, tag = 'output window, operand 0']
    %9 = vsyncpa [#allocation3], 0
    %s10 = scalar_lea.sflag [#allocation3], 1
    %11 = vsyncpa %s10, 0
    %12 = vsyncpa [#allocation6], 0
    %13 = vsyncpa [#allocation4], 0
    %s14 = scalar_lea.sflag [#allocation4], 1
    %15 = vsyncpa %s14, 0
    loop: start=0, step=1, limit=4
    $region2: #{tpu_custom_call.1} parent=1 // loop_pre_header
      _
    $region3: #{tpu_custom_call.1} parent=1 // loop_header
      %s17 = sphi 0, %s21
      %p18 = scmp.ge.s32.totalorder %s17, 4
      %s27 = sphi 0, %s29
      %s30 = sphi 0, %s27
      %s31 = sphi 0, %s30
      %s47 = sphi 0, %s31
      %s51 = sphi 0, %s51
      %s53 = sphi 0, %s51
      %s54 = sphi 0, %s53
      %s68 = sphi 0, %s54
      %s72 = sphi 0, %s72
      %s74 = sphi 0, %s72
      %s75 = sphi 0, %s74
      %s89 = sphi 0, %s75
      %s93 = sphi 0, %s93
      %s95 = sphi 0, %s93
      %s96 = sphi 0, %s95
      %s110 = sphi 0, %s96
      %s116 = sphi 0, %s118
      %s119 = sphi 0, %s116
      %s120 = sphi 0, %s119
      %s136 = sphi 0, %s120
    $region4: #{tpu_custom_call.1} parent=1 // loop_header_branch
      %20 = sbr.rel (%p18) target = $region8
    $region5: #{tpu_custom_call.1} parent=1 // loop_body
      %s22 = ssub.s32 %s17, 1
      %s23 = ssub.s32 %s17, 2
      %s24 = sadd.s32 %s17, 1
      %s25 = ssub.s32 %s17, %s24
      %p26 = scmp.eq.s32.totalorder %s25, 0
      %s28 = sadd.s32 %s27, 1
      %s29 = scalar_select %p26, %s27, %s28
      %p32 = pneg %p26
      %p33 = scmp.eq.s32.totalorder %s17, 1
      %p34 = por %p32, %p33
      %p35 = scmp.ne.s32.totalorder %s27, %s30
      %p36 = scmp.eq.s32.totalorder %s17, 0
      %p37 = por %p35, %p36
      %p38 = scmp.ne.s32.totalorder %s27, %s30
      %p39 = scmp.eq.s32.totalorder %s22, 1
      %p40 = por %p38, %p39
      %p41 = scmp.ne.s32.totalorder %s30, %s31
      %p42 = scmp.eq.s32.totalorder %s22, 0
      %p43 = por %p41, %p42
      %p44 = scmp.ne.s32.totalorder %s30, %s31
      %p45 = scmp.eq.s32.totalorder %s23, 1
      %p46 = por %p44, %p45
      %p48 = scmp.ne.s32.totalorder %s31, %s47
      %p49 = scmp.eq.s32.totalorder %s23, 0
      %p50 = por %p48, %p49
      %s52 = sadd.s32 %s51, 1
      %p55 = scmp.eq.s32.totalorder %s17, 1
      %p56 = scmp.ne.s32.totalorder %s51, %s53
      %p57 = scmp.eq.s32.totalorder %s17, 0
      %p58 = por %p56, %p57
      %p59 = scmp.ne.s32.totalorder %s51, %s53
      %p60 = scmp.eq.s32.totalorder %s22, 1
      %p61 = por %p59, %p60
      %p62 = scmp.ne.s32.totalorder %s53, %s54
      %p63 = scmp.eq.s32.totalorder %s22, 0
      %p64 = por %p62, %p63
      %p65 = scmp.ne.s32.totalorder %s53, %s54
      %p66 = scmp.eq.s32.totalorder %s23, 1
      %p67 = por %p65, %p66
      %p69 = scmp.ne.s32.totalorder %s54, %s68
      %p70 = scmp.eq.s32.totalorder %s23, 0
      %p71 = por %p69, %p70
      %s73 = sadd.s32 %s72, 1
      %p76 = scmp.eq.s32.totalorder %s17, 1
      %p77 = scmp.ne.s32.totalorder %s72, %s74
      %p78 = scmp.eq.s32.totalorder %s17, 0
      %p79 = por %p77, %p78
      %p80 = scmp.ne.s32.totalorder %s72, %s74
      %p81 = scmp.eq.s32.totalorder %s22, 1
      %p82 = por %p80, %p81
      %p83 = scmp.ne.s32.totalorder %s74, %s75
      %p84 = scmp.eq.s32.totalorder %s22, 0
      %p85 = por %p83, %p84
      %p86 = scmp.ne.s32.totalorder %s74, %s75
      %p87 = scmp.eq.s32.totalorder %s23, 1
      %p88 = por %p86, %p87
      %p90 = scmp.ne.s32.totalorder %s75, %s89
      %p91 = scmp.eq.s32.totalorder %s23, 0
      %p92 = por %p90, %p91
      %s94 = sadd.s32 %s93, 1
      %p97 = scmp.eq.s32.totalorder %s17, 1
      %p98 = scmp.ne.s32.totalorder %s93, %s95
      %p99 = scmp.eq.s32.totalorder %s17, 0
      %p100 = por %p98, %p99
      %p101 = scmp.ne.s32.totalorder %s93, %s95
      %p102 = scmp.eq.s32.totalorder %s22, 1
      %p103 = por %p101, %p102
      %p104 = scmp.ne.s32.totalorder %s95, %s96
      %p105 = scmp.eq.s32.totalorder %s22, 0
      %p106 = por %p104, %p105
      %p107 = scmp.ne.s32.totalorder %s95, %s96
      %p108 = scmp.eq.s32.totalorder %s23, 1
      %p109 = por %p107, %p108
      %p111 = scmp.ne.s32.totalorder %s96, %s110
      %p112 = scmp.eq.s32.totalorder %s23, 0
      %p113 = por %p111, %p112
      %s114 = ssub.s32 %s17, %s24
      %p115 = scmp.eq.s32.totalorder %s114, 0
      %s117 = sadd.s32 %s116, 1
      %s118 = scalar_select %p115, %s116, %s117
      %p121 = pneg %p115
      %p122 = scmp.eq.s32.totalorder %s17, 1
      %p123 = por %p121, %p122
      %p124 = scmp.ne.s32.totalorder %s116, %s119
      %p125 = scmp.eq.s32.totalorder %s17, 0
      %p126 = por %p124, %p125
      %p127 = scmp.ne.s32.totalorder %s116, %s119
      %p128 = scmp.eq.s32.totalorder %s22, 1
      %p129 = por %p127, %p128
      %p130 = scmp.ne.s32.totalorder %s119, %s120
      %p131 = scmp.eq.s32.totalorder %s22, 0
      %p132 = por %p130, %p131
      %p133 = scmp.ne.s32.totalorder %s119, %s120
      %p134 = scmp.eq.s32.totalorder %s23, 1
      %p135 = por %p133, %p134
      %p137 = scmp.ne.s32.totalorder %s120, %s136
      %p138 = scmp.eq.s32.totalorder %s23, 0
      %p139 = por %p137, %p138
      %p140 = scmp.le.s32.totalorder 1, %s17
      %p141 = scmp.lt.s32.totalorder %s17, 3
      %p142 = pnand %p140, %p141
      %p143 = pneg %p142
      // Predicated region
      $region9: #{tpu_custom_call.1} parent=5 // pred_check
        _
      $region10: #{tpu_custom_call.1} parent=5 // pred_check_branch
        %145 = sbr.rel (%p142) target = $region12
      $region11: #{tpu_custom_call.1} parent=5 // pred_region
        %s146 = ssub.s32 %s17, 1
        // Predicated region
        $region13: #{tpu_custom_call.1} parent=11 // pred_check
          %p147 = pneg %p64
        $region14: #{tpu_custom_call.1} parent=11 // pred_check_branch
          %149 = sbr.rel (%p147) target = $region16
        $region15: #{tpu_custom_call.1} parent=11 // pred_region
          _
        $region16: #{tpu_custom_call.1} parent=11 // pred_fallthru
          _
        // Predicated region
        $region17: #{tpu_custom_call.1} parent=11 // pred_check
          %p150 = pneg %p85
        $region18: #{tpu_custom_call.1} parent=11 // pred_check_branch
          %152 = sbr.rel (%p150) target = $region20
        $region19: #{tpu_custom_call.1} parent=11 // pred_region
          _
        $region20: #{tpu_custom_call.1} parent=11 // pred_fallthru
          _
        // Predicated region
        $region21: #{tpu_custom_call.1} parent=11 // pred_check
          %p153 = pneg %p106
        $region22: #{tpu_custom_call.1} parent=11 // pred_check_branch
          %155 = sbr.rel (%p153) target = $region24
        $region23: #{tpu_custom_call.1} parent=11 // pred_region
          %s157 = ssub.s32 256, 256
          %158 = vsyncadd [#allocation6], %s157
          %s159 = sshll.u32 [#allocation5], 4
          %s160 = int_to_ptr.vmem [resolvable:$true] %s159
          %165 = dma.hbm_to_vmem [thread:$0]  %s3, 256, %s160, [#allocation6], 64, 64, 4
        $region24: #{tpu_custom_call.1} parent=11 // pred_fallthru
          _
      $region12: #{tpu_custom_call.1} parent=5 // pred_fallthru
        _
      %p166 = scmp.lt.s32.totalorder %s17, 2
      // Predicated region
      $region25: #{tpu_custom_call.1} parent=5 // pred_check
        %p167 = pneg %p166
      $region26: #{tpu_custom_call.1} parent=5 // pred_check_branch
        %169 = sbr.rel (%p167) target = $region28
      $region27: #{tpu_custom_call.1} parent=5 // pred_region
        // Predicated region
        $region29: #{tpu_custom_call.1} parent=27 // pred_check
          %p170 = pneg %p37
        $region30: #{tpu_custom_call.1} parent=27 // pred_check_branch
          %172 = sbr.rel (%p170) target = $region32
        $region31: #{tpu_custom_call.1} parent=27 // pred_region
          %s173 = sand.u32 %s27, 1
          %s174 = scalar_lea.sflag [#allocation3], %s173
          %s175 = sand.u32 %s27, 1
          %s176 = smul.addr %s175, 16
          %s177 = scalar_lea.vmem [#allocation2], %s176
          %s179 = ssub.s32 256, 256
          %180 = vsyncadd %s174, %s179
          %s181 = smul.addr %s17, 2
          %s182 = smul.addr %s181, 128
          %s183 = scalar_lea.hbm %s0, %s182
          %s184 = sshll.u32 %s177, 4
          %s185 = int_to_ptr.vmem [resolvable:$true] %s184
          %190 = dma.hbm_to_vmem [thread:$0]  %s183, 256, %s185, %s174, 128, 128, 8
        $region32: #{tpu_custom_call.1} parent=27 // pred_fallthru
          _
      $region28: #{tpu_custom_call.1} parent=5 // pred_fallthru
        _
      %p191 = scmp.le.s32.totalorder 1, %s17
      %p192 = scmp.lt.s32.totalorder %s17, 3
      %p193 = pnand %p191, %p192
      %p194 = pneg %p193
      // Predicated region
      $region33: #{tpu_custom_call.1} parent=5 // pred_check
        _
      $region34: #{tpu_custom_call.1} parent=5 // pred_check_branch
        %196 = sbr.rel (%p193) target = $region36
      $region35: #{tpu_custom_call.1} parent=5 // pred_region
        %s197 = ssub.s32 %s17, 1
        %s198 = sand.u32 %s30, 1
        %s199 = scalar_lea.sflag [#allocation3], %s198
        %s200 = sand.u32 %s30, 1
        %s201 = smul.addr %s200, 16
        %s202 = scalar_lea.vmem [#allocation2], %s201
        // Predicated region
        $region37: #{tpu_custom_call.1} parent=35 // pred_check
          %p203 = pneg %p43
        $region38: #{tpu_custom_call.1} parent=35 // pred_check_branch
          %205 = sbr.rel (%p203) target = $region40
        $region39: #{tpu_custom_call.1} parent=35 // pred_region
          %206 = dma.done %s199, 256
        $region40: #{tpu_custom_call.1} parent=35 // pred_fallthru
          _
        // Predicated region
        $region41: #{tpu_custom_call.1} parent=35 // pred_check
          %p207 = pneg %p106
        $region42: #{tpu_custom_call.1} parent=35 // pred_check_branch
          %209 = sbr.rel (%p207) target = $region44
        $region43: #{tpu_custom_call.1} parent=35 // pred_region
          %210 = dma.done [#allocation6], 256
        $region44: #{tpu_custom_call.1} parent=35 // pred_fallthru
          _
        %s211 = sand.u32 %s30, 1
        %s212 = scalar_lea.sflag [#allocation3], %s211
        %s213 = sand.u32 %s30, 1
        %s214 = smul.addr %s213, 16
        %s215 = scalar_lea.vmem [#allocation2], %s214
        %p216 = pneg %p43
        %p217 = pneg %p40
        %p218 = pneg %p64
        %p219 = pneg %p61
        %p220 = pneg %p85
        %p221 = pneg %p82
        %p222 = pneg %p106
        %p223 = pneg %p103
        %p224 = pneg %p132
        %p225 = pneg %p129
        %s226 = sand.u32 %s119, 1
        %s227 = scalar_lea.sflag [#allocation4], %s226
        %s228 = sand.u32 %s119, 1
        %s229 = smul.addr %s228, 8
        %s230 = scalar_lea.vmem [#allocation7], %s229
        %v232 = vld [vmem:[%s202] sm:$0xff]
        %v233 = vld [vmem:[%s202 + $0x8] sm:$0xff]
        %v234 = vld [vmem:[%s1] sm:$0x1]
        %v235 = vld [vmem:[%s2] sm:$0x1]
        %vm236 = vcmask 261120
        %v237 = vsel %vm236, %v232, 0.0
        %238 = vadd.xlane.f32.xlu0 %v237
        %v239 = vpop.xlane.xlu0 %238
        %v240 = vsel %vm236, %v233, 0.0
        %241 = vadd.xlane.f32.xlu0 %v240
        %v242 = vpop.xlane.xlu0 %241
        %v243 = vrcp.pop 32.0
        %v244 = vmul.f32 %v239, %v243
        %v245 = vmul.f32 %v242, %v243
        %v246 = vsub.f32 %v232, %v244
        %v247 = vsub.f32 %v233, %v245
        %v248 = vmul.f32 %v246, %v246
        %v249 = vmul.f32 %v247, %v247
        %v250 = vsel %vm236, %v248, 0.0
        %251 = vadd.xlane.f32.xlu0 %v250
        %v252 = vpop.xlane.xlu0 %251
        %v253 = vsel %vm236, %v249, 0.0
        %254 = vadd.xlane.f32.xlu0 %v253
        %v255 = vpop.xlane.xlu0 %254
        %v256 = vmul.f32 %v252, %v243
        %v257 = vmul.f32 %v255, %v243
        %v258 = vadd.f32 %v256, 1e-05
        %v259 = vadd.f32 %v257, 1e-05
        %v260 = vrsqrt.pop %v258
        %v261 = vrsqrt.pop %v259
        %v262 = vmul.f32 %v246, %v260
        %v263 = vmul.f32 %v247, %v261
        %v265 = vlaneseq
        %v266 = vshrl.u32 %v265, 7
        %v267 = vsub.s32 0, %v266
        %v268 = vrot.slane %v234, %v267
        %v270 = vmul.f32 %v262, %v268
        %v271 = vmul.f32 %v263, %v268
        %v273 = vlaneseq
        %v274 = vshrl.u32 %v273, 7
        %v275 = vsub.s32 0, %v274
        %v276 = vrot.slane %v235, %v275
        %v278 = vadd.f32 %v270, %v276
        %v279 = vadd.f32 %v271, %v276
        %v280 = vpack.c.bf16 %v279, %v278
        %v281 = vld [vmem:[#allocation5] sm:$0xf]
        %v282 = vld [vmem:[#allocation5 + $0x4] sm:$0xf]
        %v283 = vld [vmem:[#allocation5 + $0x8] sm:$0xf]
        %v284 = vld [vmem:[#allocation5 + $0xc] sm:$0xf]
        %v289 = vunpack.c.l.b16 %v281
        %v290 = vunpack.c.l.b16 %v282
        %v291 = vunpack.c.l.b16 %v283
        %v292 = vunpack.c.l.b16 %v284
        %v293 = vpack.c.b16 %v290, %v289
        %v294 = vpack.c.b16 %v292, %v291
        %v298 = vsel %vm236, %v280, 0
        %300 = vmatprep.subr.bf16.mxu0 0
        %301 = vmatpush1.bf16.msra.mxu0 0
        %302 = vmatprep.subr.bf16.mxu0 0
        %303 = vmatpush1.bf16.msra.mxu0 0
        %304 = vmatprep.subr.bf16.mxu0 0
        %305 = vmatpush1.bf16.msra.mxu0 0
        %306 = vmatprep.subr.bf16.mxu0 0
        %307 = vmatpush1.bf16.msra.mxu0 0
        %308 = vmatprep.subr.bf16.mxu0 0
        %309 = vmatpush1.bf16.msra.mxu0 0
        %310 = vmatprep.subr.bf16.mxu0 0
        %311 = vmatpush1.bf16.msra.mxu0 0
        %312 = vmatprep.subr.bf16.mxu0 0
        %313 = vmatpush1.bf16.msra.mxu0 %v294
        %314 = vmatprep.subr.bf16.mxu0 0
        %315 = vmatpush1.bf16.msra.mxu0 %v293
        %316 = vmatprep.subr.bf16.mxu0 0
        %317 = vmatpush2.bf16.msra.mxu0 0
        %318 = vmatprep.subr.bf16.mxu0 0
        %319 = vmatpush2.bf16.msra.mxu0 0
        %320 = vmatprep.subr.bf16.mxu0 0
        %321 = vmatpush2.bf16.msra.mxu0 0
        %322 = vmatprep.subr.bf16.mxu0 0
        %323 = vmatpush2.bf16.msra.mxu0 0
        %324 = vmatprep.subr.bf16.mxu0 0
        %325 = vmatpush2.bf16.msra.mxu0 0
        %326 = vmatprep.subr.bf16.mxu0 0
        %327 = vmatpush2.bf16.msra.mxu0 0
        %328 = vmatprep.subr.bf16.mxu0 0
        %329 = vmatpush2.bf16.msra.mxu0 0
        %330 = vmatprep.subr.bf16.mxu0 0
        %331 = vmatpush2.bf16.msra.mxu0 0
        %332 = vmatprep.mubr.bf16.mxu0 0
        %333 = vmatmul.mubr.bf16.gmra.mxu0 %v298
        %v334 = vpop.f32.mrf.mxu0
        %v335 = vadd.f32 0.0, %v334
        %v336 = vpop.f32.mrf.mxu0
        %v337 = vpop.f32.mrf.mxu0
        %v338 = vadd.f32 0.0, %v337
        %v339 = vpop.f32.mrf.mxu0
        %340 = vdwg.mxu0
        %v341 = vpack.c.bf16 %v338, %v335
        %v343 = vunpack.c.l.b16 %v341
        %v344 = vunpack.c.h.b16 %v341
        %v345 = vpack.c.b16 %v343, %v343
        %v346 = vpack.c.b16 %v344, %v344
        %vm349 = vcmask 781312
        %350 = vst.msk [vmem:[%s230] sm:$0xf] %vm349, %v345
        %351 = vst.msk [vmem:[%s230 + $0x4] sm:$0xf] %vm349, %v346
        %s352 = sand.u32 %s119, 1
        %s353 = scalar_lea.sflag [#allocation4], %s352
        %s354 = sand.u32 %s119, 1
        %s355 = smul.addr %s354, 8
        %s356 = scalar_lea.vmem [#allocation7], %s355
        // Predicated region
        $region45: #{tpu_custom_call.1} parent=35 // pred_check
          %p357 = pneg %p129
        $region46: #{tpu_custom_call.1} parent=35 // pred_check_branch
          %359 = sbr.rel (%p357) target = $region48
        $region47: #{tpu_custom_call.1} parent=35 // pred_region
          %s361 = ssub.s32 128, 128
          %362 = vsyncadd %s353, %s361
          %s363 = smul.addr %s22, 2
          %s364 = smul.addr %s363, 64
          %s365 = scalar_lea.hbm %s4, %s364
          %s366 = sshll.u32 %s356, 4
          %s367 = int_to_ptr.vmem [resolvable:$true] %s366
          %372 = dma.vmem_to_hbm [thread:$0]  %s367, 128, %s365, %s353, 64, 64, 4
        $region48: #{tpu_custom_call.1} parent=35 // pred_fallthru
          _
      $region36: #{tpu_custom_call.1} parent=5 // pred_fallthru
        _
      %p373 = scmp.le.s32.totalorder 2, %s17
      // Predicated region
      $region49: #{tpu_custom_call.1} parent=5 // pred_check
        %p374 = pneg %p373
      $region50: #{tpu_custom_call.1} parent=5 // pred_check_branch
        %376 = sbr.rel (%p374) target = $region52
      $region51: #{tpu_custom_call.1} parent=5 // pred_region
        %s377 = ssub.s32 %s17, 2
        // Predicated region
        $region53: #{tpu_custom_call.1} parent=51 // pred_check
          %p378 = pneg %p135
        $region54: #{tpu_custom_call.1} parent=51 // pred_check_branch
          %380 = sbr.rel (%p378) target = $region56
        $region55: #{tpu_custom_call.1} parent=51 // pred_region
          %s381 = sand.u32 %s120, 1
          %s382 = scalar_lea.sflag [#allocation4], %s381
          %s383 = sand.u32 %s120, 1
          %s384 = smul.addr %s383, 8
          %s385 = scalar_lea.vmem [#allocation7], %s384
          %386 = dma.done %s382, 128
        $region56: #{tpu_custom_call.1} parent=51 // pred_fallthru
          _
      $region52: #{tpu_custom_call.1} parent=5 // pred_fallthru
        _
    $region6: #{tpu_custom_call.1} parent=1 // loop_footer
      %s21 = sadd.s32 1, %s17
    $region7: #{tpu_custom_call.1} parent=1 // loop_footer_branch
      %16 = sbr.rel target = $region3
    $region8: #{tpu_custom_call.1} parent=1 // loop_exit
      _
    %387 = vsyncpa [#allocation3], 1
    %s388 = scalar_lea.sflag [#allocation3], 1
    %389 = vsyncpa %s388, 1
    %390 = vsyncpa [#allocation6], 1
    %391 = vsyncpa [#allocation4], 1
    %s392 = scalar_lea.sflag [#allocation4], 1
    %393 = vsyncpa %s392, 1

</llo_original>
